<compile_context>
chip_gen: v7x
topology: tpu7x:2x2x1
jax: 0.10.0
libtpu: 0.0.40
codegen_flags: <defaults>
</compile_context>

<pallas_src>
import jax
import jax.numpy as jnp
from jax import lax
from jax.experimental import pallas as pl
from jax.experimental.pallas import tpu as pltpu


def _tpu_generation_info():
    """Returns (target_block_bytes, tensorcores_per_chip) for this TPU gen."""
    kind = ""
    try:
        kind = jax.devices()[0].device_kind.lower()
    except Exception:
        pass
    if "v6" in kind:                       # v6e: 32 MiB scoped-VMEM default, 1 TC
        budget, cores = 8 * 1024 * 1024, 1
    elif "v5 lite" in kind or "v5e" in kind or "v5lite" in kind:
        budget, cores = 6 * 1024 * 1024, 1  # v5e: 16 MiB scoped default, 1 TC
    elif "7" in kind:                      # v7x: 64 MiB physical VMEM, 2 TCs/chip
        budget, cores = 8 * 1024 * 1024, 2
    else:                                   # conservative default
        budget, cores = 6 * 1024 * 1024, 1
    # Safety cap from the physical VMEM size, if queryable.
    try:
        info = pltpu.get_tpu_info()
        vmem = getattr(info, "vmem_capacity_bytes", None)
        if vmem:
            budget = min(budget, max(1 << 20, int(vmem) // 8))
    except Exception:
        pass
    return budget, cores


def _choose_tiles(N, C, HW, itemsize, budget, num_cores):
    """Pick (bn, tile_c, tile_hw) so one x block is <= budget bytes."""
    sample_bytes = C * HW * itemsize
    if sample_bytes <= budget:
        # Whole sample per step; pack batch elements to amortise step overhead.
        bn = max(1, min(N, budget // max(sample_bytes, 1)))
        if num_cores >= 2 and N >= 2:
            bn = min(bn, pl.cdiv(N, 2))     # keep >= 2 parallel steps (2-TC chips)
        return int(bn), int(C), int(HW)

    # Sample too big: tile channels with full HW (contiguous slabs, no mask).
    row_bytes = HW * itemsize
    max_tc = budget // max(row_bytes, 1)
    if max_tc >= 8:
        if max_tc >= 128:
            tile_c = (max_tc // 128) * 128   # lane-aligned scratch writes
        else:
            tile_c = (max_tc // 8) * 8       # sublane-aligned block dim
        return 1, int(min(tile_c, C)), int(HW)

    # Last resort (enormous HW): tile both channels and spatial.
    tile_c = min(C, 8)
    lanes = budget // max(tile_c * itemsize, 1)
    tile_hw = max(128, (lanes // 128) * 128)
    tile_hw = min(tile_hw, pl.cdiv(HW, 128) * 128)
    return 1, int(tile_c), int(tile_hw)


def _make_kernel(bn, C, tile_c, c_steps, hw_total, tile_hw, needs_mask):
    inv_hw = 1.0 / float(hw_total)

    # Lane-chunk for the strip-mined reduction: keep per-chunk f32 temps ~1 MiB.
    rows = max(bn * tile_c, 1)
    chunk = (1 << 20) // (rows * 4)
    chunk = max(512, min(8192, (chunk // 128) * 128))

    def kernel(x_ref, w1t_ref, w2t_ref, o_ref, sum_ref, max_ref):
        # x_ref  : (bn, tile_c, tile_hw)   native dtype, contiguous NCHW slab
        # w1t_ref: (C, Cr)  first 1x1 conv weight (transposed)
        # w2t_ref: (Cr, C)  second 1x1 conv weight (transposed)
        # o_ref  : (bn, 1, C) sigmoid channel gate
        # sum_ref / max_ref: (c_steps, bn, tile_c) f32 running accumulators
        c = pl.program_id(1)
        hw = pl.program_id(2)
        n_hw = pl.num_programs(2)
        c_idx = 0 if c_steps == 1 else c     # static fast-path when not c-tiled

        @pl.when(hw == 0)
        def _init():
            sum_ref[c_idx] = jnp.zeros((bn, tile_c), jnp.float32)
            max_ref[c_idx] = jnp.full((bn, tile_c), -jnp.inf, jnp.float32)

        def _partial(xc, global_start, masked):
            xs = xc.astype(jnp.float32)           # f32 accumulation for the mean
            xm = xc                               # max stays in native dtype
            if masked:                            # only traced for the ragged tail
                pos = global_start + lax.broadcasted_iota(jnp.int32, xc.shape, 2)
                valid = pos < hw_total
                xs = jnp.where(valid, xs, 0.0)
                xm = jnp.where(valid, xm, jnp.asarray(-jnp.inf, dtype=xm.dtype))
            return (jnp.sum(xs, axis=-1),
                    jnp.max(xm, axis=-1).astype(jnp.float32))

        def _accumulate(masked):
            base = hw * tile_hw
            if tile_hw > chunk:
                # Strip-mine the lane reduction so no block-sized f32 temp exists.
                n_full = tile_hw // chunk
                tail = tile_hw - n_full * chunk

                def body(k, carry):
                    s, m = carry
                    off = pl.multiple_of(k * chunk, 128)
                    ds_, dm_ = _partial(x_ref[:, :, pl.ds(off, chunk)],
                                        base + off, masked)
                    return s + ds_, jnp.maximum(m, dm_)

                s, m = lax.fori_loop(
                    0, n_full, body,
                    (jnp.zeros((bn, tile_c), jnp.float32),
                     jnp.full((bn, tile_c), -jnp.inf, jnp.float32)),
                    unroll=True)
                if tail:
                    ds_, dm_ = _partial(x_ref[:, :, pl.ds(n_full * chunk, tail)],
                                        base + n_full * chunk, masked)
                    s = s + ds_
                    m = jnp.maximum(m, dm_)
            else:
                s, m = _partial(x_ref[...], base, masked)

            sum_ref[c_idx] = sum_ref[c_idx] + s
            max_ref[c_idx] = jnp.maximum(max_ref[c_idx], m)

        if needs_mask:
            # Mask only the final hw step; earlier steps accumulate unmasked.
            @pl.when(hw < n_hw - 1)
            def _accum_body():
                _accumulate(False)

            @pl.when(hw == n_hw - 1)
            def _accum_tail():
                _accumulate(True)
        else:
            _accumulate(False)

        @pl.when(jnp.logical_and(c == pl.num_programs(1) - 1, hw == n_hw - 1))
        def _finalize():
            # Stitch the per-c-slice accumulators back to (bn, C).
            s = jnp.concatenate([sum_ref[i] for i in range(c_steps)], axis=-1)[:, :C]
            mx = jnp.concatenate([max_ref[i] for i in range(c_steps)], axis=-1)[:, :C]
            avg_p = s * inv_hw                                     # (bn, C)
            w1t = w1t_ref[...].astype(jnp.float32)                 # (C, Cr)
            w2t = w2t_ref[...].astype(jnp.float32)                 # (Cr, C)
            # One stacked W1 matmul for both branches; post-ReLU add is linear,
            # so a single W2 matmul suffices.
            stacked = jnp.concatenate([avg_p, mx], axis=0)         # (2*bn, C)
            h = jnp.maximum(jnp.dot(stacked, w1t,
                                    preferred_element_type=jnp.float32), 0.0)
            h = h[:bn] + h[bn:]
            y = jnp.dot(h, w2t, preferred_element_type=jnp.float32)
            o_ref[...] = jax.nn.sigmoid(y)[:, None, :].astype(o_ref.dtype)

    return kernel


def channel_attention(x_nchw, w1, w2, *, target_block_bytes=None):
    """x_nchw: (N, C, H, W); w1: (Cr, C, 1, 1); w2: (C, Cr, 1, 1).
    Returns the channel-attention gate of shape (N, C, 1, 1)."""
    N, C, H, W = x_nchw.shape
    Cr = w1.shape[0]
    HW = H * W

    # Native layout: flattening H,W is free (no transpose -> single HBM pass).
    x = x_nchw.reshape(N, C, HW)
    w1t = jnp.transpose(w1.reshape(Cr, C))   # (C, Cr) tiny one-time op
    w2t = jnp.transpose(w2.reshape(C, Cr))   # (Cr, C)

    budget, num_cores = _tpu_generation_info()
    if target_block_bytes is not None:
        budget = int(target_block_bytes)

    bn, tile_c, tile_hw = _choose_tiles(N, C, HW, x_nchw.dtype.itemsize,
                                        budget, num_cores)
    n_steps = pl.cdiv(N, bn)
    c_steps = pl.cdiv(C, tile_c)
    hw_steps = pl.cdiv(HW, tile_hw)
    needs_mask = (HW % tile_hw) != 0

    kernel = _make_kernel(bn, C, tile_c, c_steps, HW, tile_hw, needs_mask)

    out = pl.pallas_call(
        kernel,
        out_shape=jax.ShapeDtypeStruct((N, 1, C), x_nchw.dtype),
        grid_spec=pltpu.PrefetchScalarGridSpec(
            num_scalar_prefetch=0,
            grid=(n_steps, c_steps, hw_steps),
            in_specs=[
                pl.BlockSpec((bn, tile_c, tile_hw), lambda n, c, hw: (n, c, hw)),
                pl.BlockSpec((C, Cr), lambda n, c, hw: (0, 0)),
                pl.BlockSpec((Cr, C), lambda n, c, hw: (0, 0)),
            ],
            out_specs=pl.BlockSpec((bn, 1, C), lambda n, c, hw: (n, 0, 0)),
            scratch_shapes=[
                pltpu.VMEM((c_steps, bn, tile_c), jnp.float32),   # running sum
                pltpu.VMEM((c_steps, bn, tile_c), jnp.float32),   # running max
            ],
        ),
        compiler_params=pltpu.CompilerParams(
            dimension_semantics=("parallel", "arbitrary", "arbitrary")),
    )(x, w1t, w2t)

    return out.reshape(N, C, 1, 1)


def channel_attention_ref(x_nchw, w1, w2):
    """Pure-JAX reference (matches the PyTorch module)."""
    N, C, H, W = x_nchw.shape
    Cr = w1.shape[0]
    xf = x_nchw.astype(jnp.float32)
    avg_p = jnp.mean(xf, axis=(2, 3))                  # (N, C)
    max_p = jnp.max(xf, axis=(2, 3))                   # (N, C)
    w1m = w1.reshape(Cr, C).astype(jnp.float32)
    w2m = w2.reshape(C, Cr).astype(jnp.float32)

    def fc(p):
        h = jnp.maximum(p @ w1m.T, 0.0)
        return h @ w2m.T

    out = jax.nn.sigmoid(fc(avg_p) + fc(max_p))
    return out.reshape(N, C, 1, 1).astype(x_nchw.dtype)


if __name__ == "__main__":
    ratio = 16
    N, C, H, W = 2, 64, 16, 16
    Cr = C // ratio
    key = jax.random.PRNGKey(0)
    kx, k1, k2 = jax.random.split(key, 3)
    x = jax.random.normal(kx, (N, C, H, W), dtype=jnp.float32)
    w1 = jax.random.normal(k1, (Cr, C, 1, 1), dtype=jnp.float32) * (1.0 / jnp.sqrt(C))
    w2 = jax.random.normal(k2, (C, Cr, 1, 1), dtype=jnp.float32) * (1.0 / jnp.sqrt(Cr))

    ref = channel_attention_ref(x, w1, w2)

    # --- Case 1: default generation-aware budget (whole sample per step) -----
    out1 = jax.block_until_ready(channel_attention(x, w1, w2))
    assert out1.shape == (N, C, 1, 1), out1.shape
    assert jnp.allclose(out1, ref, atol=1e-5, rtol=1e-5), "case1 mismatch"

    # --- Case 2: force channel tiling (contiguous slabs), C % tile_c == 0 ----
    out2 = jax.block_until_ready(
        channel_attention(x, w1, w2, target_block_bytes=32 * 1024))
    assert jnp.allclose(out2, ref, atol=1e-5, rtol=1e-5), "case2 mismatch"

    # --- Case 2b: channel tiling with ragged last channel block --------------
    out2b = jax.block_until_ready(
        channel_attention(x, w1, w2, target_block_bytes=24 * 1024))
    assert jnp.allclose(out2b, ref, atol=1e-5, rtol=1e-5), "case2b mismatch"

    # --- Case 3: ragged spatial extent + c/hw fallback (masked last hw step) -
    H3 = W3 = 13
    x3 = jax.random.normal(jax.random.PRNGKey(3), (N, C, H3, W3), dtype=jnp.float32)
    ref3 = channel_attention_ref(x3, w1, w2)
    out3 = jax.block_until_ready(
        channel_attention(x3, w1, w2, target_block_bytes=4 * 1024))
    assert jnp.allclose(out3, ref3, atol=1e-5, rtol=1e-5), "case3 mismatch"

    # --- Case 4: HW large enough to exercise the strip-mined reduction -------
    H4 = W4 = 72
    x4 = jax.random.normal(jax.random.PRNGKey(4), (N, C, H4, W4), dtype=jnp.float32)
    ref4 = channel_attention_ref(x4, w1, w2)
    out4 = jax.block_until_ready(channel_attention(x4, w1, w2))
    assert jnp.allclose(out4, ref4, atol=1e-5, rtol=1e-5), "case4 mismatch"

    print("KERNEL_OK")
</pallas_src>

<mosaic_0001>
module attributes {stable_mosaic.version = 11 : i64} {
  func.func @kernel(%arg0: i32, %arg1: i32, %arg2: i32, %arg3: memref<2x64x256xf32, #tpu.memory_space<vmem>>, %arg4: memref<64x4xf32, #tpu.memory_space<vmem>>, %arg5: memref<4x64xf32, #tpu.memory_space<vmem>>, %arg6: memref<2x1x64xf32, #tpu.memory_space<vmem>>, %arg7: memref<1x2x64xf32, #tpu.memory_space<vmem>>, %arg8: memref<1x2x64xf32, #tpu.memory_space<vmem>>) attributes {dimension_semantics = [#tpu.dimension_semantics<parallel>, #tpu.dimension_semantics<arbitrary>, #tpu.dimension_semantics<arbitrary>], iteration_bounds = array<i64: 1, 1, 1>, scalar_prefetch = 0 : i64, scratch_operands = 2 : i64, tpu.core_type = #tpu.core_type<tc>, window_params = [{transform_indices = @transform_0, window_bounds = array<i64: 2, 64, 256>}, {pipeline_mode = #tpu.pipeline_mode<synchronous>, transform_indices = @transform_1, window_bounds = array<i64: 64, 4>}, {pipeline_mode = #tpu.pipeline_mode<synchronous>, transform_indices = @transform_2, window_bounds = array<i64: 4, 64>}, {transform_indices = @transform_3, window_bounds = array<i64: 2, 1, 64>}]} {
    %c0_i32 = arith.constant 0 : i32
    %0 = arith.cmpi eq, %arg2, %c0_i32 : i32
    %1 = arith.extui %0 : i1 to i32
    %c0_i32_0 = arith.constant 0 : i32
    %2 = arith.cmpi ne, %1, %c0_i32_0 : i32
    scf.if %2 {
      %cst_19 = arith.constant 0.000000e+00 : f32
      %23 = vector.broadcast %cst_19 : f32 to vector<2x64xf32>
      %c0_20 = arith.constant 0 : index
      %c0_21 = arith.constant 0 : index
      %c0_22 = arith.constant 0 : index
      %24 = vector.load %arg7[%c0_20, %c0_21, %c0_22] : memref<1x2x64xf32, #tpu.memory_space<vmem>>, vector<1x2x64xf32>
      %25 = vector.shape_cast %24 : vector<1x2x64xf32> to vector<2x64xf32>
      %26 = vector.shape_cast %23 : vector<2x64xf32> to vector<1x2x64xf32>
      tpu.vector_store %arg7[%c0_20, %c0_21, %c0_22], %26 {strides = array<i32>} : memref<1x2x64xf32, #tpu.memory_space<vmem>>, vector<1x2x64xf32>,
      %cst_23 = arith.constant 0xFF800000 : f32
      %27 = vector.broadcast %cst_23 : f32 to vector<2x64xf32>
      %c0_24 = arith.constant 0 : index
      %c0_25 = arith.constant 0 : index
      %c0_26 = arith.constant 0 : index
      %28 = vector.load %arg8[%c0_24, %c0_25, %c0_26] : memref<1x2x64xf32, #tpu.memory_space<vmem>>, vector<1x2x64xf32>
      %29 = vector.shape_cast %28 : vector<1x2x64xf32> to vector<2x64xf32>
      %30 = vector.shape_cast %27 : vector<2x64xf32> to vector<1x2x64xf32>
      tpu.vector_store %arg8[%c0_24, %c0_25, %c0_26], %30 {strides = array<i32>} : memref<1x2x64xf32, #tpu.memory_space<vmem>>, vector<1x2x64xf32>,
    } else {
    }
    %c0 = arith.constant 0 : index
    %c0_1 = arith.constant 0 : index
    %c0_2 = arith.constant 0 : index
    %3 = vector.load %arg3[%c0, %c0_1, %c0_2] : memref<2x64x256xf32, #tpu.memory_space<vmem>>, vector<2x64x256xf32>
    %cst = arith.constant dense<0.000000e+00> : vector<2x64xf32>
    %4 = vector.multi_reduction <add>, %3, %cst [2] : vector<2x64x256xf32> to vector<2x64xf32>
    %cst_3 = arith.constant dense<0xFF800000> : vector<2x64xf32>
    %5 = vector.multi_reduction <maximumf>, %3, %cst_3 [2] : vector<2x64x256xf32> to vector<2x64xf32>
    %c0_4 = arith.constant 0 : index
    %c0_5 = arith.constant 0 : index
    %c0_6 = arith.constant 0 : index
    %6 = vector.load %arg7[%c0_4, %c0_5, %c0_6] : memref<1x2x64xf32, #tpu.memory_space<vmem>>, vector<1x2x64xf32>
    %7 = vector.shape_cast %6 : vector<1x2x64xf32> to vector<2x64xf32>
    %8 = arith.addf %7, %4 : vector<2x64xf32>
    %c0_7 = arith.constant 0 : index
    %c0_8 = arith.constant 0 : index
    %c0_9 = arith.constant 0 : index
    %9 = vector.load %arg7[%c0_7, %c0_8, %c0_9] : memref<1x2x64xf32, #tpu.memory_space<vmem>>, vector<1x2x64xf32>
    %10 = vector.shape_cast %9 : vector<1x2x64xf32> to vector<2x64xf32>
    %11 = vector.shape_cast %8 : vector<2x64xf32> to vector<1x2x64xf32>
    tpu.vector_store %arg7[%c0_7, %c0_8, %c0_9], %11 {strides = array<i32>} : memref<1x2x64xf32, #tpu.memory_space<vmem>>, vector<1x2x64xf32>,
    %c0_10 = arith.constant 0 : index
    %c0_11 = arith.constant 0 : index
    %c0_12 = arith.constant 0 : index
    %12 = vector.load %arg8[%c0_10, %c0_11, %c0_12] : memref<1x2x64xf32, #tpu.memory_space<vmem>>, vector<1x2x64xf32>
    %13 = vector.shape_cast %12 : vector<1x2x64xf32> to vector<2x64xf32>
    %14 = arith.maximumf %13, %5 : vector<2x64xf32>
    %c0_13 = arith.constant 0 : index
    %c0_14 = arith.constant 0 : index
    %c0_15 = arith.constant 0 : index
    %15 = vector.load %arg8[%c0_13, %c0_14, %c0_15] : memref<1x2x64xf32, #tpu.memory_space<vmem>>, vector<1x2x64xf32>
    %16 = vector.shape_cast %15 : vector<1x2x64xf32> to vector<2x64xf32>
    %17 = vector.shape_cast %14 : vector<2x64xf32> to vector<1x2x64xf32>
    tpu.vector_store %arg8[%c0_13, %c0_14, %c0_15], %17 {strides = array<i32>} : memref<1x2x64xf32, #tpu.memory_space<vmem>>, vector<1x2x64xf32>,
    %c0_i32_16 = arith.constant 0 : i32
    %18 = arith.cmpi eq, %arg1, %c0_i32_16 : i32
    %c0_i32_17 = arith.constant 0 : i32
    %19 = arith.cmpi eq, %arg2, %c0_i32_17 : i32
    %20 = arith.andi %18, %19 : i1
    %21 = arith.extui %20 : i1 to i32
    %c0_i32_18 = arith.constant 0 : i32
    %22 = arith.cmpi ne, %21, %c0_i32_18 : i32
    scf.if %22 {
      %c0_19 = arith.constant 0 : index
      %c0_20 = arith.constant 0 : index
      %c0_21 = arith.constant 0 : index
      %23 = vector.load %arg7[%c0_19, %c0_20, %c0_21] : memref<1x2x64xf32, #tpu.memory_space<vmem>>, vector<1x2x64xf32>
      %24 = vector.shape_cast %23 : vector<1x2x64xf32> to vector<2x64xf32>
      %c0_22 = arith.constant 0 : index
      %c0_23 = arith.constant 0 : index
      %c0_24 = arith.constant 0 : index
      %25 = vector.load %arg8[%c0_22, %c0_23, %c0_24] : memref<1x2x64xf32, #tpu.memory_space<vmem>>, vector<1x2x64xf32>
      %26 = vector.shape_cast %25 : vector<1x2x64xf32> to vector<2x64xf32>
      %cst_25 = arith.constant 3.906250e-03 : f32
      %27 = vector.broadcast %cst_25 : f32 to vector<2x64xf32>
      %28 = arith.mulf %24, %27 : vector<2x64xf32>
      %c0_26 = arith.constant 0 : index
      %c0_27 = arith.constant 0 : index
      %29 = vector.load %arg4[%c0_26, %c0_27] : memref<64x4xf32, #tpu.memory_space<vmem>>, vector<64x4xf32>
      %c0_28 = arith.constant 0 : index
      %c0_29 = arith.constant 0 : index
      %30 = vector.load %arg5[%c0_28, %c0_29] : memref<4x64xf32, #tpu.memory_space<vmem>>, vector<4x64xf32>
      %31 = tpu.concatenate %28, %26 in 0 : vector<2x64xf32>, vector<2x64xf32> -> vector<4x64xf32>
      %cst_30 = arith.constant dense<0.000000e+00> : vector<4x4xf32>
      %32 = tpu.matmul %31, %29, %cst_30 {dimension_numbers = #tpu.dot_dimension_numbers<[1], [0], [0], [1], [0, 0, 1, 1], [], []>} : vector<4x64xf32>, vector<64x4xf32>, vector<4x4xf32> -> vector<4x4xf32>
      %cst_31 = arith.constant 0.000000e+00 : f32
      %33 = vector.broadcast %cst_31 : f32 to vector<4x4xf32>
      %34 = arith.maximumf %32, %33 : vector<4x4xf32>
      %35 = vector.extract_strided_slice %34 {offsets = [0, 0], sizes = [2, 4], strides = [1, 1]} : vector<4x4xf32> to vector<2x4xf32>
      %36 = vector.extract_strided_slice %34 {offsets = [2, 0], sizes = [2, 4], strides = [1, 1]} : vector<4x4xf32> to vector<2x4xf32>
      %37 = arith.addf %35, %36 : vector<2x4xf32>
      %cst_32 = arith.constant dense<0.000000e+00> : vector<2x64xf32>
      %38 = tpu.matmul %37, %30, %cst_32 {dimension_numbers = #tpu.dot_dimension_numbers<[1], [0], [0], [1], [0, 0, 1, 1], [], []>} : vector<2x4xf32>, vector<4x64xf32>, vector<2x64xf32> -> vector<2x64xf32>
      %39 = arith.negf %38 : vector<2x64xf32>
      %40 = math.exp %39 : vector<2x64xf32>
      %cst_33 = arith.constant 1.000000e+00 : f32
      %41 = vector.broadcast %cst_33 : f32 to vector<2x64xf32>
      %42 = arith.addf %41, %40 : vector<2x64xf32>
      %43 = arith.divf %41, %42 : vector<2x64xf32>
      %44 = vector.shape_cast %43 : vector<2x64xf32> to vector<2x1x64xf32>
      %c0_34 = arith.constant 0 : index
      %c0_35 = arith.constant 0 : index
      %c0_36 = arith.constant 0 : index
      %45 = vector.load %arg6[%c0_34, %c0_35, %c0_36] : memref<2x1x64xf32, #tpu.memory_space<vmem>>, vector<2x1x64xf32>
      tpu.vector_store %arg6[%c0_34, %c0_35, %c0_36], %44 {strides = array<i32>} : memref<2x1x64xf32, #tpu.memory_space<vmem>>, vector<2x1x64xf32>,
    } else {
    }
    return
  }
  func.func @transform_0(%arg0: i32, %arg1: i32, %arg2: i32) -> (i32, i32, i32) {
    %c0_i32 = arith.constant 0 : i32
    return %arg0, %arg1, %arg2 : i32, i32, i32
  }
  func.func @transform_1(%arg0: i32, %arg1: i32, %arg2: i32) -> (i32, i32) {
    %c0_i32 = arith.constant 0 : i32
    %c0_i32_0 = arith.constant 0 : i32
    %c0_i32_1 = arith.constant 0 : i32
    return %c0_i32, %c0_i32_0 : i32, i32
  }
  func.func @transform_2(%arg0: i32, %arg1: i32, %arg2: i32) -> (i32, i32) {
    %c0_i32 = arith.constant 0 : i32
    %c0_i32_0 = arith.constant 0 : i32
    %c0_i32_1 = arith.constant 0 : i32
    return %c0_i32, %c0_i32_0 : i32, i32
  }
  func.func @transform_3(%arg0: i32, %arg1: i32, %arg2: i32) -> (i32, i32, i32) {
    %c0_i32 = arith.constant 0 : i32
    %c0_i32_0 = arith.constant 0 : i32
    %c0_i32_1 = arith.constant 0 : i32
    return %arg0, %c0_i32, %c0_i32_0 : i32, i32, i32
  }
}

</mosaic_0001>

<llo_original>
// kernel: tpu_custom_call.1
$region0: #{tpu_custom_call.1}
  #allocation0 [shape = 'u32[]', space=smem, size = 0x4, offset = 0x4, fixed_abs, tag = 'smem constant byte address 0x4 - core index']
  #allocation1 [shape = 'u32[144,128]{1,0:T(1,128)}', space=vmem, size = 0x12000, scoped, tag = 'internal scratch']
  #allocation2 [shape = 'f32[1,2,64]{2,1,0:T(2,128)}', space=vmem, size = 0x400, scoped, tag = 'scratch operand']
  #allocation3 [shape = 'f32[1,2,64]{2,1,0:T(2,128)}', space=vmem, size = 0x400, scoped, tag = 'scratch operand']
  %s0 = inlined_call_operand.hbm [shape: f32[2,64,256], index: 0, kind: input, shape index: {}]
  %s1 = inlined_call_operand.vmem [shape: f32[64,4], index: 1, kind: input, shape index: {}]
  %s2 = inlined_call_operand.vmem [shape: f32[4,64], index: 2, kind: input, shape index: {}]
  %s3 = inlined_call_operand.hbm [shape: f32[2,1,64], index: 3, kind: output, shape index: {}]
  %s4 = sld [smem:[#allocation0]]
  $region34: #{tpu_custom_call.1} parent=0
    _
  %s6 = ssub.s32 1, %s4
  %s7 = scalar_select 0, %s6, %s4
  $region1: #{tpu_custom_call.1} parent=0
    #allocation4 [shape = 'u8[131072]{0}', space=vmem, size = 0x20000, scoped, tag = 'input window, operand 0, single buffered']
    #allocation5 [shape = 's32[1]{0}', space=sflag, size = 0x4, scoped, tag = 'scoped memory for tpu_custom_call.1']
    #allocation6 [shape = 's32[1]{0}', space=sflag, size = 0x4, scoped, tag = 'scoped memory for tpu_custom_call.1']
    #allocation7 [shape = 'u8[1024]{0}', space=vmem, size = 0x400, scoped, tag = 'output window, operand 0, single buffered']
    %8 = vsyncpa [#allocation5], 0
    %9 = vsyncpa [#allocation6], 0
    // Predicated region
    $region2: #{tpu_custom_call.1} parent=1 // pred_check
      _
    $region3: #{tpu_custom_call.1} parent=1 // pred_check_branch
      %11 = sbr.rel (0) target = $region5
    $region4: #{tpu_custom_call.1} parent=1 // pred_region
      %s13 = ssub.s32 4096, 4096
      %14 = vsyncadd [#allocation5], %s13
      %s15 = sshll.u32 [#allocation4], 4
      %s16 = int_to_ptr.vmem [resolvable:$true] %s15
      %21 = dma.hbm_to_vmem [thread:$0]  %s0, 4096, %s16, [#allocation5], 256, 256, 16
    $region5: #{tpu_custom_call.1} parent=1 // pred_fallthru
      _
    // Predicated region
    $region6: #{tpu_custom_call.1} parent=1 // pred_check
      _
    $region7: #{tpu_custom_call.1} parent=1 // pred_check_branch
      %23 = sbr.rel (0) target = $region9
    $region8: #{tpu_custom_call.1} parent=1 // pred_region
      _
    $region9: #{tpu_custom_call.1} parent=1 // pred_fallthru
      _
    // Predicated region
    $region10: #{tpu_custom_call.1} parent=1 // pred_check
      _
    $region11: #{tpu_custom_call.1} parent=1 // pred_check_branch
      %25 = sbr.rel (0) target = $region13
    $region12: #{tpu_custom_call.1} parent=1 // pred_region
      _
    $region13: #{tpu_custom_call.1} parent=1 // pred_fallthru
      _
    // Predicated region
    $region14: #{tpu_custom_call.1} parent=1 // pred_check
      _
    $region15: #{tpu_custom_call.1} parent=1 // pred_check_branch
      %27 = sbr.rel (0) target = $region17
    $region16: #{tpu_custom_call.1} parent=1 // pred_region
      %28 = dma.done [#allocation5], 4096
    $region17: #{tpu_custom_call.1} parent=1 // pred_fallthru
      _
    %p29 = scmp.eq.s32.totalorder 0, 0
    // Predicated region
    $region18: #{tpu_custom_call.1} parent=1 // pred_check
      %p30 = pneg %p29
    $region19: #{tpu_custom_call.1} parent=1 // pred_check_branch
      %32 = sbr.rel (%p30) target = $region21
    $region20: #{tpu_custom_call.1} parent=1 // pred_region
      %vm33 = vcmask 517120
      %34 = vst.msk [vmem:[#allocation2] sm:$0x3] %vm33, 0.0
      %35 = vst.msk [vmem:[#allocation3] sm:$0x3] %vm33, -inf
    $region21: #{tpu_custom_call.1} parent=1 // pred_fallthru
      _
    %v36 = vld [vmem:[#allocation4] sm:$0xff]
    %v37 = vld [vmem:[#allocation4 + $0x8] sm:$0xff]
    %v38 = vld [vmem:[#allocation4 + $0x10] sm:$0xff]
    %v39 = vld [vmem:[#allocation4 + $0x18] sm:$0xff]
    %v40 = vld [vmem:[#allocation4 + $0x20] sm:$0xff]
    %v41 = vld [vmem:[#allocation4 + $0x28] sm:$0xff]
    %v42 = vld [vmem:[#allocation4 + $0x30] sm:$0xff]
    %v43 = vld [vmem:[#allocation4 + $0x38] sm:$0xff]
    %v44 = vld [vmem:[#allocation4 + $0x40] sm:$0xff]
    %v45 = vld [vmem:[#allocation4 + $0x48] sm:$0xff]
    %v46 = vld [vmem:[#allocation4 + $0x50] sm:$0xff]
    %v47 = vld [vmem:[#allocation4 + $0x58] sm:$0xff]
    %v48 = vld [vmem:[#allocation4 + $0x60] sm:$0xff]
    %v49 = vld [vmem:[#allocation4 + $0x68] sm:$0xff]
    %v50 = vld [vmem:[#allocation4 + $0x70] sm:$0xff]
    %v51 = vld [vmem:[#allocation4 + $0x78] sm:$0xff]
    %v52 = vld [vmem:[#allocation4 + $0x80] sm:$0xff]
    %v53 = vld [vmem:[#allocation4 + $0x88] sm:$0xff]
    %v54 = vld [vmem:[#allocation4 + $0x90] sm:$0xff]
    %v55 = vld [vmem:[#allocation4 + $0x98] sm:$0xff]
    %v56 = vld [vmem:[#allocation4 + $0xa0] sm:$0xff]
    %v57 = vld [vmem:[#allocation4 + $0xa8] sm:$0xff]
    %v58 = vld [vmem:[#allocation4 + $0xb0] sm:$0xff]
    %v59 = vld [vmem:[#allocation4 + $0xb8] sm:$0xff]
    %v60 = vld [vmem:[#allocation4 + $0xc0] sm:$0xff]
    %v61 = vld [vmem:[#allocation4 + $0xc8] sm:$0xff]
    %v62 = vld [vmem:[#allocation4 + $0xd0] sm:$0xff]
    %v63 = vld [vmem:[#allocation4 + $0xd8] sm:$0xff]
    %v64 = vld [vmem:[#allocation4 + $0xe0] sm:$0xff]
    %v65 = vld [vmem:[#allocation4 + $0xe8] sm:$0xff]
    %v66 = vld [vmem:[#allocation4 + $0xf0] sm:$0xff]
    %v67 = vld [vmem:[#allocation4 + $0xf8] sm:$0xff]
    %v68 = vadd.f32 %v36, %v37
    %69 = vadd.xlane.f32.xlu0 %v68
    %v70 = vpop.xlane.xlu0 %69
    %v71 = vadd.f32 %v38, %v39
    %72 = vadd.xlane.f32.xlu0 %v71
    %v73 = vpop.xlane.xlu0 %72
    %v74 = vadd.f32 %v40, %v41
    %75 = vadd.xlane.f32.xlu0 %v74
    %v76 = vpop.xlane.xlu0 %75
    %v77 = vadd.f32 %v42, %v43
    %78 = vadd.xlane.f32.xlu0 %v77
    %v79 = vpop.xlane.xlu0 %78
    %v80 = vadd.f32 %v44, %v45
    %81 = vadd.xlane.f32.xlu0 %v80
    %v82 = vpop.xlane.xlu0 %81
    %v83 = vadd.f32 %v46, %v47
    %84 = vadd.xlane.f32.xlu0 %v83
    %v85 = vpop.xlane.xlu0 %84
    %v86 = vadd.f32 %v48, %v49
    %87 = vadd.xlane.f32.xlu0 %v86
    %v88 = vpop.xlane.xlu0 %87
    %v89 = vadd.f32 %v50, %v51
    %90 = vadd.xlane.f32.xlu0 %v89
    %v91 = vpop.xlane.xlu0 %90
    %v92 = vadd.f32 %v52, %v53
    %93 = vadd.xlane.f32.xlu0 %v92
    %v94 = vpop.xlane.xlu0 %93
    %v95 = vadd.f32 %v54, %v55
    %96 = vadd.xlane.f32.xlu0 %v95
    %v97 = vpop.xlane.xlu0 %96
    %v98 = vadd.f32 %v56, %v57
    %99 = vadd.xlane.f32.xlu0 %v98
    %v100 = vpop.xlane.xlu0 %99
    %v101 = vadd.f32 %v58, %v59
    %102 = vadd.xlane.f32.xlu0 %v101
    %v103 = vpop.xlane.xlu0 %102
    %v104 = vadd.f32 %v60, %v61
    %105 = vadd.xlane.f32.xlu0 %v104
    %v106 = vpop.xlane.xlu0 %105
    %v107 = vadd.f32 %v62, %v63
    %108 = vadd.xlane.f32.xlu0 %v107
    %v109 = vpop.xlane.xlu0 %108
    %v110 = vadd.f32 %v64, %v65
    %111 = vadd.xlane.f32.xlu0 %v110
    %v112 = vpop.xlane.xlu0 %111
    %v113 = vadd.f32 %v66, %v67
    %114 = vadd.xlane.f32.xlu0 %v113
    %v115 = vpop.xlane.xlu0 %114
    %v116 = vmax.f32 %v36, %v37
    %117 = vmax.xlane.f32.xlu0 %v116
    %v118 = vpop.xlane.xlu0 %117
    %v119 = vmax.f32 %v38, %v39
    %120 = vmax.xlane.f32.xlu0 %v119
    %v121 = vpop.xlane.xlu0 %120
    %v122 = vmax.f32 %v40, %v41
    %123 = vmax.xlane.f32.xlu0 %v122
    %v124 = vpop.xlane.xlu0 %123
    %v125 = vmax.f32 %v42, %v43
    %126 = vmax.xlane.f32.xlu0 %v125
    %v127 = vpop.xlane.xlu0 %126
    %v128 = vmax.f32 %v44, %v45
    %129 = vmax.xlane.f32.xlu0 %v128
    %v130 = vpop.xlane.xlu0 %129
    %v131 = vmax.f32 %v46, %v47
    %132 = vmax.xlane.f32.xlu0 %v131
    %v133 = vpop.xlane.xlu0 %132
    %v134 = vmax.f32 %v48, %v49
    %135 = vmax.xlane.f32.xlu0 %v134
    %v136 = vpop.xlane.xlu0 %135
    %v137 = vmax.f32 %v50, %v51
    %138 = vmax.xlane.f32.xlu0 %v137
    %v139 = vpop.xlane.xlu0 %138
    %v140 = vmax.f32 %v52, %v53
    %141 = vmax.xlane.f32.xlu0 %v140
    %v142 = vpop.xlane.xlu0 %141
    %v143 = vmax.f32 %v54, %v55
    %144 = vmax.xlane.f32.xlu0 %v143
    %v145 = vpop.xlane.xlu0 %144
    %v146 = vmax.f32 %v56, %v57
    %147 = vmax.xlane.f32.xlu0 %v146
    %v148 = vpop.xlane.xlu0 %147
    %v149 = vmax.f32 %v58, %v59
    %150 = vmax.xlane.f32.xlu0 %v149
    %v151 = vpop.xlane.xlu0 %150
    %v152 = vmax.f32 %v60, %v61
    %153 = vmax.xlane.f32.xlu0 %v152
    %v154 = vpop.xlane.xlu0 %153
    %v155 = vmax.f32 %v62, %v63
    %156 = vmax.xlane.f32.xlu0 %v155
    %v157 = vpop.xlane.xlu0 %156
    %v158 = vmax.f32 %v64, %v65
    %159 = vmax.xlane.f32.xlu0 %v158
    %v160 = vpop.xlane.xlu0 %159
    %v161 = vmax.f32 %v66, %v67
    %162 = vmax.xlane.f32.xlu0 %v161
    %v163 = vpop.xlane.xlu0 %162
    %v164 = vld [vmem:[#allocation2] sm:$0x3]
    %v181 = vlaneseq
    %v182 = vand.u32 %v181, 127
    %v183 = vlaneseq
    %v184 = vshrl.u32 %v183, 7
    %v185 = vsub.s32 %v182, %v184
    %v186 = vrot.slane %v70, %v185
    %v187 = vadd.s32 %v182, 4294967288
    %v188 = vlaneseq
    %v189 = vshrl.u32 %v188, 7
    %v190 = vsub.s32 %v187, %v189
    %v191 = vrot.slane %v73, %v190
    %vm192 = vcmask 130112
    %v193 = vsel %vm192, %v191, %v186
    %v194 = vadd.s32 %v182, 4294967280
    %v195 = vlaneseq
    %v196 = vshrl.u32 %v195, 7
    %v197 = vsub.s32 %v194, %v196
    %v198 = vrot.slane %v76, %v197
    %vm199 = vcmask 195712
    %v200 = vsel %vm199, %v198, %v193
    %v201 = vadd.s32 %v182, 4294967272
    %v202 = vlaneseq
    %v203 = vshrl.u32 %v202, 7
    %v204 = vsub.s32 %v201, %v203
    %v205 = vrot.slane %v79, %v204
    %vm206 = vcmask 261312
    %v207 = vsel %vm206, %v205, %v200
    %v208 = vadd.s32 %v182, 4294967264
    %v209 = vlaneseq
    %v210 = vshrl.u32 %v209, 7
    %v211 = vsub.s32 %v208, %v210
    %v212 = vrot.slane %v82, %v211
    %vm213 = vcmask 326912
    %v214 = vsel %vm213, %v212, %v207
    %v215 = vadd.s32 %v182, 4294967256
    %v216 = vlaneseq
    %v217 = vshrl.u32 %v216, 7
    %v218 = vsub.s32 %v215, %v217
    %v219 = vrot.slane %v85, %v218
    %vm220 = vcmask 392512
    %v221 = vsel %vm220, %v219, %v214
    %v222 = vadd.s32 %v182, 4294967248
    %v223 = vlaneseq
    %v224 = vshrl.u32 %v223, 7
    %v225 = vsub.s32 %v222, %v224
    %v226 = vrot.slane %v88, %v225
    %vm227 = vcmask 458112
    %v228 = vsel %vm227, %v226, %v221
    %v229 = vadd.s32 %v182, 4294967240
    %v230 = vlaneseq
    %v231 = vshrl.u32 %v230, 7
    %v232 = vsub.s32 %v229, %v231
    %v233 = vrot.slane %v91, %v232
    %vm234 = vcmask 523712
    %v235 = vsel %vm234, %v233, %v228
    %v236 = vlaneseq
    %v237 = vshrl.u32 %v236, 7
    %v238 = vsub.s32 %v182, %v237
    %v239 = vrot.slane %v94, %v238
    %v240 = vlaneseq
    %v241 = vshrl.u32 %v240, 7
    %v242 = vsub.s32 %v187, %v241
    %v243 = vrot.slane %v97, %v242
    %v244 = vsel %vm192, %v243, %v239
    %v245 = vlaneseq
    %v246 = vshrl.u32 %v245, 7
    %v247 = vsub.s32 %v194, %v246
    %v248 = vrot.slane %v100, %v247
    %v249 = vsel %vm199, %v248, %v244
    %v250 = vlaneseq
    %v251 = vshrl.u32 %v250, 7
    %v252 = vsub.s32 %v201, %v251
    %v253 = vrot.slane %v103, %v252
    %v254 = vsel %vm206, %v253, %v249
    %v255 = vlaneseq
    %v256 = vshrl.u32 %v255, 7
    %v257 = vsub.s32 %v208, %v256
    %v258 = vrot.slane %v106, %v257
    %v259 = vsel %vm213, %v258, %v254
    %v260 = vlaneseq
    %v261 = vshrl.u32 %v260, 7
    %v262 = vsub.s32 %v215, %v261
    %v263 = vrot.slane %v109, %v262
    %v264 = vsel %vm220, %v263, %v259
    %v265 = vlaneseq
    %v266 = vshrl.u32 %v265, 7
    %v267 = vsub.s32 %v222, %v266
    %v268 = vrot.slane %v112, %v267
    %v269 = vsel %vm227, %v268, %v264
    %v270 = vlaneseq
    %v271 = vshrl.u32 %v270, 7
    %v272 = vsub.s32 %v229, %v271
    %v273 = vrot.slane %v115, %v272
    %v274 = vsel %vm234, %v273, %v269
    %vm275 = vcmask 1041409
    %v276 = vsel %vm275, %v274, %v235
    %v278 = vadd.f32 %v164, %v276
    %vm279 = vcmask 517120
    %280 = vst.msk [vmem:[#allocation2] sm:$0x3] %vm279, %v278
    %v281 = vld [vmem:[#allocation3] sm:$0x3]
    %v298 = vlaneseq
    %v299 = vshrl.u32 %v298, 7
    %v300 = vsub.s32 %v182, %v299
    %v301 = vrot.slane %v118, %v300
    %v302 = vlaneseq
    %v303 = vshrl.u32 %v302, 7
    %v304 = vsub.s32 %v187, %v303
    %v305 = vrot.slane %v121, %v304
    %v306 = vsel %vm192, %v305, %v301
    %v307 = vlaneseq
    %v308 = vshrl.u32 %v307, 7
    %v309 = vsub.s32 %v194, %v308
    %v310 = vrot.slane %v124, %v309
    %v311 = vsel %vm199, %v310, %v306
    %v312 = vlaneseq
    %v313 = vshrl.u32 %v312, 7
    %v314 = vsub.s32 %v201, %v313
    %v315 = vrot.slane %v127, %v314
    %v316 = vsel %vm206, %v315, %v311
    %v317 = vlaneseq
    %v318 = vshrl.u32 %v317, 7
    %v319 = vsub.s32 %v208, %v318
    %v320 = vrot.slane %v130, %v319
    %v321 = vsel %vm213, %v320, %v316
    %v322 = vlaneseq
    %v323 = vshrl.u32 %v322, 7
    %v324 = vsub.s32 %v215, %v323
    %v325 = vrot.slane %v133, %v324
    %v326 = vsel %vm220, %v325, %v321
    %v327 = vlaneseq
    %v328 = vshrl.u32 %v327, 7
    %v329 = vsub.s32 %v222, %v328
    %v330 = vrot.slane %v136, %v329
    %v331 = vsel %vm227, %v330, %v326
    %v332 = vlaneseq
    %v333 = vshrl.u32 %v332, 7
    %v334 = vsub.s32 %v229, %v333
    %v335 = vrot.slane %v139, %v334
    %v336 = vsel %vm234, %v335, %v331
    %v337 = vlaneseq
    %v338 = vshrl.u32 %v337, 7
    %v339 = vsub.s32 %v182, %v338
    %v340 = vrot.slane %v142, %v339
    %v341 = vlaneseq
    %v342 = vshrl.u32 %v341, 7
    %v343 = vsub.s32 %v187, %v342
    %v344 = vrot.slane %v145, %v343
    %v345 = vsel %vm192, %v344, %v340
    %v346 = vlaneseq
    %v347 = vshrl.u32 %v346, 7
    %v348 = vsub.s32 %v194, %v347
    %v349 = vrot.slane %v148, %v348
    %v350 = vsel %vm199, %v349, %v345
    %v351 = vlaneseq
    %v352 = vshrl.u32 %v351, 7
    %v353 = vsub.s32 %v201, %v352
    %v354 = vrot.slane %v151, %v353
    %v355 = vsel %vm206, %v354, %v350
    %v356 = vlaneseq
    %v357 = vshrl.u32 %v356, 7
    %v358 = vsub.s32 %v208, %v357
    %v359 = vrot.slane %v154, %v358
    %v360 = vsel %vm213, %v359, %v355
    %v361 = vlaneseq
    %v362 = vshrl.u32 %v361, 7
    %v363 = vsub.s32 %v215, %v362
    %v364 = vrot.slane %v157, %v363
    %v365 = vsel %vm220, %v364, %v360
    %v366 = vlaneseq
    %v367 = vshrl.u32 %v366, 7
    %v368 = vsub.s32 %v222, %v367
    %v369 = vrot.slane %v160, %v368
    %v370 = vsel %vm227, %v369, %v365
    %v371 = vlaneseq
    %v372 = vshrl.u32 %v371, 7
    %v373 = vsub.s32 %v229, %v372
    %v374 = vrot.slane %v163, %v373
    %v375 = vsel %vm234, %v374, %v370
    %v376 = vsel %vm275, %v375, %v336
    %v378 = vmax.f32 %v281, %v376
    %379 = vst.msk [vmem:[#allocation3] sm:$0x3] %vm279, %v378
    %p380 = scmp.eq.s32.totalorder 0, 0
    %p381 = pnand %p380, %p29
    %p382 = pneg %p381
    // Predicated region
    $region22: #{tpu_custom_call.1} parent=1 // pred_check
      _
    $region23: #{tpu_custom_call.1} parent=1 // pred_check_branch
      %384 = sbr.rel (%p381) target = $region25
    $region24: #{tpu_custom_call.1} parent=1 // pred_region
      %v385 = vld [vmem:[#allocation2] sm:$0x3]
      %v386 = vld [vmem:[#allocation3] sm:$0x3]
      %v387 = vmul.f32 %v385, 0.00390625
      %v388 = vld [vmem:[%s1] sm:$0xff]
      %v389 = vld [vmem:[%s1 + $0x8] sm:$0xff]
      %v390 = vld [vmem:[%s1 + $0x10] sm:$0xff]
      %v391 = vld [vmem:[%s1 + $0x18] sm:$0xff]
      %v392 = vld [vmem:[%s1 + $0x20] sm:$0xff]
      %v393 = vld [vmem:[%s1 + $0x28] sm:$0xff]
      %v394 = vld [vmem:[%s1 + $0x30] sm:$0xff]
      %v395 = vld [vmem:[%s1 + $0x38] sm:$0xff]
      %v396 = vld [vmem:[%s2] sm:$0xf]
      %v398 = vrot.slane %v386, 6
      %vm400 = vcmask 1041408
      %v401 = vsel %vm400, %v387, %v398
      %vm402 = vcmask 523264
      %v404 = vsel %vm402, %v401, 0
      %406 = vmatprep.subr.mxu0 0.0
      %407 = vmatpush1.msra.mxu0 %v388
      %408 = vmatprep.subr.mxu0 0.0
      %409 = vmatpush1.msra.mxu0 %v389
      %410 = vmatprep.subr.mxu0 0.0
      %411 = vmatpush1.msra.mxu0 %v390
      %412 = vmatprep.subr.mxu0 0.0
      %413 = vmatpush1.msra.mxu0 %v391
      %414 = vmatprep.subr.mxu0 0.0
      %415 = vmatpush1.msra.mxu0 %v392
      %416 = vmatprep.subr.mxu0 0.0
      %417 = vmatpush1.msra.mxu0 %v393
      %418 = vmatprep.subr.mxu0 0.0
      %419 = vmatpush1.msra.mxu0 %v394
      %420 = vmatprep.subr.mxu0 0.0
      %421 = vmatpush1.msra.mxu0 %v395
      %422 = vmatprep.subr.mxu0 0.0
      %423 = vmatpush1.msra.mxu0 0.0
      %424 = vmatprep.subr.mxu0 0.0
      %425 = vmatpush1.msra.mxu0 0.0
      %426 = vmatprep.subr.mxu0 0.0
      %427 = vmatpush1.msra.mxu0 0.0
      %428 = vmatprep.subr.mxu0 0.0
      %429 = vmatpush1.msra.mxu0 0.0
      %430 = vmatprep.subr.mxu0 0.0
      %431 = vmatpush1.msra.mxu0 0.0
      %432 = vmatprep.subr.mxu0 0.0
      %433 = vmatpush1.msra.mxu0 0.0
      %434 = vmatprep.subr.mxu0 0.0
      %435 = vmatpush1.msra.mxu0 0.0
      %436 = vmatprep.subr.mxu0 0.0
      %437 = vmatpush1.msra.mxu0 0.0
      %438 = vmatprep.subr.mxu0 0.0
      %439 = vmatpush1.msra.mxu0 0.0
      %440 = vmatprep.subr.mxu0 0.0
      %441 = vmatpush1.msra.mxu0 0.0
      %442 = vmatprep.subr.mxu0 0.0
      %443 = vmatpush1.msra.mxu0 0.0
      %444 = vmatprep.subr.mxu0 0.0
      %445 = vmatpush1.msra.mxu0 0.0
      %446 = vmatprep.subr.mxu0 0.0
      %447 = vmatpush1.msra.mxu0 0.0
      %448 = vmatprep.subr.mxu0 0.0
      %449 = vmatpush1.msra.mxu0 0.0
      %450 = vmatprep.subr.mxu0 0.0
      %451 = vmatpush1.msra.mxu0 0.0
      %452 = vmatprep.subr.mxu0 0.0
      %453 = vmatpush1.msra.mxu0 0.0
      %454 = vmatprep.subr.mxu0 0.0
      %455 = vmatpush1.msra.mxu0 0.0
      %456 = vmatprep.subr.mxu0 0.0
      %457 = vmatpush1.msra.mxu0 0.0
      %458 = vmatprep.subr.mxu0 0.0
      %459 = vmatpush1.msra.mxu0 0.0
      %460 = vmatprep.subr.mxu0 0.0
      %461 = vmatpush1.msra.mxu0 0.0
      %462 = vmatprep.subr.mxu0 0.0
      %463 = vmatpush1.msra.mxu0 0.0
      %464 = vmatprep.subr.mxu0 0.0
      %465 = vmatpush1.msra.mxu0 0.0
      %466 = vmatprep.subr.mxu0 0.0
      %467 = vmatpush1.msra.mxu0 0.0
      %468 = vmatprep.subr.mxu0 0.0
      %469 = vmatpush1.msra.mxu0 0.0
      %470 = vmatprep.mubr.f32.mxu0 0.0
      %471 = vmatmul.mubr.f32.gmra.mrb[0].mxu0 %v404
      %v472 = vpop.f32.mrb[0].mxu0
      %v473 = vadd.f32 0.0, %v472
      %v474 = vpop.f32.mrb[0].mxu0
      %475 = vdwg.mxu0
      %v476 = vmax.f32 %v473, 0.0
      %v478 = vrot.slane %v476, 2
      %v480 = vadd.f32 %v476, %v478
      %vm481 = vcmask 31744
      %v483 = vsel %vm481, %v480, 0
      %vm485 = vcmask 1043456
      %v487 = vsel %vm485, %v396, 0
      %489 = vmatprep.subr.mxu0 0.0
      %490 = vmatpush1.msra.mxu0 %v487
      %491 = vmatprep.subr.mxu0 0.0
      %492 = vmatpush1.msra.mxu0 0.0
      %493 = vmatprep.subr.mxu0 0.0
      %494 = vmatpush1.msra.mxu0 0.0
      %495 = vmatprep.subr.mxu0 0.0
      %496 = vmatpush1.msra.mxu0 0.0
      %497 = vmatprep.subr.mxu0 0.0
      %498 = vmatpush1.msra.mxu0 0.0
      %499 = vmatprep.subr.mxu0 0.0
      %500 = vmatpush1.msra.mxu0 0.0
      %501 = vmatprep.subr.mxu0 0.0
      %502 = vmatpush1.msra.mxu0 0.0
      %503 = vmatprep.subr.mxu0 0.0
      %504 = vmatpush1.msra.mxu0 0.0
      %505 = vmatprep.subr.mxu0 0.0
      %506 = vmatpush1.msra.mxu0 0.0
      %507 = vmatprep.subr.mxu0 0.0
      %508 = vmatpush1.msra.mxu0 0.0
      %509 = vmatprep.subr.mxu0 0.0
      %510 = vmatpush1.msra.mxu0 0.0
      %511 = vmatprep.subr.mxu0 0.0
      %512 = vmatpush1.msra.mxu0 0.0
      %513 = vmatprep.subr.mxu0 0.0
      %514 = vmatpush1.msra.mxu0 0.0
      %515 = vmatprep.subr.mxu0 0.0
      %516 = vmatpush1.msra.mxu0 0.0
      %517 = vmatprep.subr.mxu0 0.0
      %518 = vmatpush1.msra.mxu0 0.0
      %519 = vmatprep.subr.mxu0 0.0
      %520 = vmatpush1.msra.mxu0 0.0
      %521 = vmatprep.subr.mxu0 0.0
      %522 = vmatpush1.msra.mxu0 0.0
      %523 = vmatprep.subr.mxu0 0.0
      %524 = vmatpush1.msra.mxu0 0.0
      %525 = vmatprep.subr.mxu0 0.0
      %526 = vmatpush1.msra.mxu0 0.0
      %527 = vmatprep.subr.mxu0 0.0
      %528 = vmatpush1.msra.mxu0 0.0
      %529 = vmatprep.subr.mxu0 0.0
      %530 = vmatpush1.msra.mxu0 0.0
      %531 = vmatprep.subr.mxu0 0.0
      %532 = vmatpush1.msra.mxu0 0.0
      %533 = vmatprep.subr.mxu0 0.0
      %534 = vmatpush1.msra.mxu0 0.0
      %535 = vmatprep.subr.mxu0 0.0
      %536 = vmatpush1.msra.mxu0 0.0
      %537 = vmatprep.subr.mxu0 0.0
      %538 = vmatpush1.msra.mxu0 0.0
      %539 = vmatprep.subr.mxu0 0.0
      %540 = vmatpush1.msra.mxu0 0.0
      %541 = vmatprep.subr.mxu0 0.0
      %542 = vmatpush1.msra.mxu0 0.0
      %543 = vmatprep.subr.mxu0 0.0
      %544 = vmatpush1.msra.mxu0 0.0
      %545 = vmatprep.subr.mxu0 0.0
      %546 = vmatpush1.msra.mxu0 0.0
      %547 = vmatprep.subr.mxu0 0.0
      %548 = vmatpush1.msra.mxu0 0.0
      %549 = vmatprep.subr.mxu0 0.0
      %550 = vmatpush1.msra.mxu0 0.0
      %551 = vmatprep.subr.mxu0 0.0
      %552 = vmatpush1.msra.mxu0 0.0
      %553 = vmatprep.mubr.f32.mxu0 0.0
      %554 = vmatmul.mubr.f32.gmra.mrb[0].mxu0 %v483
      %v555 = vpop.f32.mrb[0].mxu0
      %v556 = vadd.f32 0.0, %v555
      %v557 = vpop.f32.mrb[0].mxu0
      %558 = vdwg.mxu0
      %v559 = vxor.u32 %v556, 2147483648
      %v560 = vmul.f32 %v559, 1.442695
      %v561 = vpow.pop %v560
      %v562 = vadd.f32 %v561, 1.0
      %v563 = vrcp.pop %v562
      %v564 = vmul.f32 1.0, %v563
      %v567 = vunpack.c.l.s4 1966171168
      %v568 = vunpack.c.0.s8 %v567
      %v569 = vlaneseq
      %v570 = vshrl.u32 %v569, 7
      %v571 = vsub.s32 %v568, %v570
      %v572 = vrot.slane %v564, %v571
      %v573 = vcombine.high %v572, %v572
      %v575 = vunpack.c.l.s4 1966171168
      %v576 = vunpack.c.0.s8 %v575
      %v577 = vlaneseq
      %v578 = vshrl.u32 %v577, 7
      %v579 = vsub.s32 %v576, %v578
      %v580 = vrot.slane %v572, %v579
      %v582 = vunpack.c.l.s4 1966171168
      %v583 = vunpack.c.0.s8 %v582
      %v584 = vlaneseq
      %v585 = vshrl.u32 %v584, 7
      %v586 = vsub.s32 %v583, %v585
      %v587 = vrot.slane %v573, %v586
      %vm590 = vcmask 516096
      %591 = vst.msk [vmem:[#allocation7] sm:$0x1] %vm590, %v580
      %592 = vst.msk [vmem:[#allocation7 + $0x1] sm:$0x1] %vm590, %v587
    $region25: #{tpu_custom_call.1} parent=1 // pred_fallthru
      _
    // Predicated region
    $region26: #{tpu_custom_call.1} parent=1 // pred_check
      _
    $region27: #{tpu_custom_call.1} parent=1 // pred_check_branch
      %594 = sbr.rel (0) target = $region29
    $region28: #{tpu_custom_call.1} parent=1 // pred_region
      %s596 = ssub.s32 32, 32
      %597 = vsyncadd [#allocation6], %s596
      %s598 = sshll.u32 [#allocation7], 4
      %s599 = int_to_ptr.vmem [resolvable:$true] %s598
      %604 = dma.vmem_to_hbm [thread:$0]  %s599, 32, %s3, [#allocation6], 16, 16, 1
    $region29: #{tpu_custom_call.1} parent=1 // pred_fallthru
      _
    // Predicated region
    $region30: #{tpu_custom_call.1} parent=1 // pred_check
      _
    $region31: #{tpu_custom_call.1} parent=1 // pred_check_branch
      %606 = sbr.rel (0) target = $region33
    $region32: #{tpu_custom_call.1} parent=1 // pred_region
      %607 = dma.done [#allocation6], 32
    $region33: #{tpu_custom_call.1} parent=1 // pred_fallthru
      _
    %608 = vsyncpa [#allocation5], 1
    %609 = vsyncpa [#allocation6], 1

</llo_original>
